<compile_context>
chip_gen: v5e
topology: v5e:2x2
jax: 0.10.0
libtpu: 0.0.40
codegen_flags: <defaults>
</compile_context>

<pallas_src>
import functools

import jax
import jax.numpy as jnp
from jax.experimental import pallas as pl
from jax.experimental.pallas import tpu as pltpu

LANE = 128          # vreg lane width — pad all hidden/output widths to this
MAX_BATCH_TILE = 1024


def _round_up(n, m):
    return ((n + m - 1) // m) * m


# --------------------------------------------------------------------------
# One-time parameter preparation (model-init time, NOT per forward call).
# --------------------------------------------------------------------------
def prepare_head_params(weights, biases, param_dtype=jnp.bfloat16):
    """Pad Linear params to 128-lane output widths and cast for the kernel.

    weights: list of (in_i, out_i) arrays (transposed vs torch.nn.Linear)
    biases:  list of (out_i,) arrays
    Layer 0 keeps its native input width (a full-dim block is legal); every
    later layer's input width equals the previous layer's padded output width
    (padding rows/cols are zero, so padded activation columns stay exactly 0
    and contribute nothing).
    """
    padded_ws, padded_bs = [], []
    prev_in = weights[0].shape[0]
    for w, b in zip(weights, biases):
        in_d, out_d = w.shape
        out_p = _round_up(out_d, LANE)
        w_p = jnp.zeros((prev_in, out_p), param_dtype).at[:in_d, :out_d].set(
            w.astype(param_dtype))
        b_p = jnp.zeros((1, out_p), jnp.float32).at[:, :out_d].set(
            b.astype(jnp.float32))
        padded_ws.append(w_p)
        padded_bs.append(b_p)
        prev_in = out_p
    return padded_ws, padded_bs


# --------------------------------------------------------------------------
# Kernel
# --------------------------------------------------------------------------
def _mlp_head_kernel(num_layers, *refs):
    """Fused MLP: (Linear -> ReLU) * (num_layers-1) -> Linear.

    refs layout: x_ref, w0, b0, w1, b1, ..., w_{L-1}, b_{L-1}, out_ref
      x_ref:  (TB, H)            f32  (cast to bf16 in-kernel for the MXU)
      w_i:    (in_p, out_p)      bf16 (zero-padded to 128-lane output widths)
      b_i:    (1, out_p)         f32
      out:    (1, TB)            f32  lane-dense row = column 0 of final acc
    """
    x_ref = refs[0]
    out_ref = refs[-1]
    wb_refs = refs[1:-1]

    # bf16 cast on the VPU; hides under the MXU work.
    h = x_ref[...].astype(jnp.bfloat16)
    for i in range(num_layers):
        w = wb_refs[2 * i][...]        # bf16 (in_p, out_p)
        b = wb_refs[2 * i + 1][...]    # f32  (1, out_p)
        # dropout_similarity[i] is identity in eval mode.
        acc = jnp.dot(h, w, preferred_element_type=jnp.float32) + b
        if i < num_layers - 1:
            # F.relu in f32 on the VPU, back to bf16 for the next MXU pass.
            h = jnp.maximum(acc, 0.0).astype(jnp.bfloat16)
        else:
            # Only column 0 of acc is the real logit.  Transpose on the XLU
            # (idle slot) and store a lane-dense (1, TB) row -> HBM writeback
            # drops from TB*128*4 B to TB*4 B, with an unmasked vst.
            out_ref[...] = jnp.transpose(acc)[:1, :].astype(out_ref.dtype)


# --------------------------------------------------------------------------
# Per-call wrapper (jit this)
# --------------------------------------------------------------------------
def tasklayer_similarity(x, padded_ws, padded_bs, *, batch_tile=None):
    """Similarity head forward.

    x:          (B, H) pooler embeddings (native dtype, un-padded)
    padded_ws:  output of prepare_head_params (bf16, lane-padded)
    padded_bs:  output of prepare_head_params (f32, lane-padded)
    returns:    (B, 1) similarity logits
    """
    B, H = x.shape
    num_layers = len(padded_ws)
    assert padded_ws[0].shape[0] == H, "layer-0 weight must match hidden size"
    out_p_final = padded_ws[-1].shape[1]

    if batch_tile is None:
        # 2 grid steps by default: keeps both v7x TensorCores busy; costs one
        # extra ~0.35us step on single-TC v5e/v6e.  Lane-multiple so the
        # transposed output store stays lane-dense; capped for VMEM sanity.
        batch_tile = min(MAX_BATCH_TILE, _round_up(pl.cdiv(B, 2), LANE))
    grid = (pl.cdiv(B, batch_tile),)

    in_arrays = [x]
    in_specs = [pl.BlockSpec((batch_tile, H), lambda i: (i, 0))]
    for w_p, b_p in zip(padded_ws, padded_bs):
        in_arrays += [w_p, b_p]
        # Constant index_map -> no re-DMA across batch tiles; VMEM-resident.
        in_specs += [
            pl.BlockSpec(w_p.shape, lambda i: (0, 0)),
            pl.BlockSpec(b_p.shape, lambda i: (0, 0)),
        ]

    # Transposed, lane-dense output: one f32 row of length B.
    out_shape = jax.ShapeDtypeStruct((1, B), jnp.float32)
    out_specs = pl.BlockSpec((1, batch_tile), lambda i: (0, i))

    kernel = functools.partial(_mlp_head_kernel, num_layers)

    y_row = pl.pallas_call(
        kernel,
        out_shape=out_shape,
        grid_spec=pltpu.PrefetchScalarGridSpec(
            num_scalar_prefetch=0,
            grid=grid,
            in_specs=in_specs,
            out_specs=out_specs,
        ),
        compiler_params=pltpu.CompilerParams(
            # batch tiles are independent -> megacore / dual-TC sharding on v7x
            dimension_semantics=("parallel",),
        ),
    )(*in_arrays)

    del out_p_final  # padding columns never leave the kernel
    return jnp.transpose(y_row).astype(x.dtype)   # (B, 1)


# --------------------------------------------------------------------------
# Reference + init helpers
# --------------------------------------------------------------------------
def init_linear_params(key, in_features, out_features, dtype=jnp.float32):
    """Deterministic init mimicking torch.nn.Linear default (U(-k, k), k=1/sqrt(in))."""
    kw, kb = jax.random.split(key)
    bound = 1.0 / jnp.sqrt(jnp.float32(in_features))
    # Stored as (in, out) so the kernel computes x @ W + b.
    w = jax.random.uniform(kw, (in_features, out_features), dtype, -bound, bound)
    b = jax.random.uniform(kb, (out_features,), dtype, -bound, bound)
    return w, b


def reference_head(x, weights, biases, compute_dtype=jnp.float32):
    """Pure-JAX reference. compute_dtype=bfloat16 mirrors the kernel's MXU path."""
    h = x
    for i, (w, b) in enumerate(zip(weights, biases)):
        h = jnp.dot(h.astype(compute_dtype), w.astype(compute_dtype),
                    preferred_element_type=jnp.float32) + b.astype(jnp.float32)
        if i < len(weights) - 1:
            h = jnp.maximum(h, 0.0)
    return h.astype(x.dtype)


if __name__ == "__main__":
    # Small, module-consistent shapes:
    #   batch = 200 pooled [CLS] embeddings of hidden size 128 (stand-in for
    #   768), config.sim_nlayers = [64, 32], final Linear -> 1 logit.
    # B is deliberately not a multiple of the batch tile to exercise the
    # ragged last grid block.
    B = 200
    BERT_HIDDEN_SIZE = 128
    SIM_NLAYERS = (64, 32)

    key = jax.random.PRNGKey(0)
    keys = jax.random.split(key, 1 + len(SIM_NLAYERS) + 1)
    k_x, k_layers = keys[0], keys[1:]

    # Synthetic pooler_output (what BertSimilarity.forward would return).
    x = jax.random.normal(k_x, (B, BERT_HIDDEN_SIZE), dtype=jnp.float32)

    # linear_similarity: H -> n0 -> n1 -> 1
    layer_dims = [BERT_HIDDEN_SIZE, *SIM_NLAYERS, 1]
    weights, biases = [], []
    for i in range(len(layer_dims) - 1):
        w, b = init_linear_params(k_layers[i], layer_dims[i], layer_dims[i + 1])
        weights.append(w)
        biases.append(b)

    # One-time parameter prep (hoisted out of the per-call path).
    padded_ws, padded_bs = prepare_head_params(weights, biases)
    padded_ws = jax.block_until_ready(padded_ws)
    padded_bs = jax.block_until_ready(padded_bs)

    head = jax.jit(tasklayer_similarity)
    y = head(x, padded_ws, padded_bs)
    y = jax.block_until_ready(y)

    assert y.shape == (B, 1), y.shape

    # Matches the kernel's bf16-operand / f32-accumulate path tightly ...
    y_ref_bf16 = reference_head(x, weights, biases, compute_dtype=jnp.bfloat16)
    assert jnp.allclose(y, y_ref_bf16, atol=5e-3, rtol=5e-3), \
        "mismatch vs bf16 reference"
    # ... and the full-f32 torch-equivalent semantics loosely (bf16 rounding).
    y_ref_f32 = reference_head(x, weights, biases, compute_dtype=jnp.float32)
    assert jnp.allclose(y, y_ref_f32, atol=5e-2, rtol=5e-2), \
        "mismatch vs f32 reference"

    print("KERNEL_OK")
</pallas_src>

<mosaic_0001>
module attributes {stable_mosaic.version = 11 : i64} {
  func.func @_mlp_head_kernel(%arg0: i32, %arg1: memref<128x128xf32, #tpu.memory_space<vmem>>, %arg2: memref<128x128xbf16, #tpu.memory_space<vmem>>, %arg3: memref<1x128xf32, #tpu.memory_space<vmem>>, %arg4: memref<128x128xbf16, #tpu.memory_space<vmem>>, %arg5: memref<1x128xf32, #tpu.memory_space<vmem>>, %arg6: memref<128x128xbf16, #tpu.memory_space<vmem>>, %arg7: memref<1x128xf32, #tpu.memory_space<vmem>>, %arg8: memref<1x128xf32, #tpu.memory_space<vmem>>) attributes {dimension_semantics = [#tpu.dimension_semantics<parallel>], iteration_bounds = array<i64: 2>, scalar_prefetch = 0 : i64, scratch_operands = 0 : i64, tpu.core_type = #tpu.core_type<tc>, window_params = [{transform_indices = @transform_0, window_bounds = array<i64: 128, 128>}, {pipeline_mode = #tpu.pipeline_mode<synchronous>, transform_indices = @transform_1, window_bounds = array<i64: 128, 128>}, {pipeline_mode = #tpu.pipeline_mode<synchronous>, transform_indices = @transform_2, window_bounds = array<i64: 1, 128>}, {pipeline_mode = #tpu.pipeline_mode<synchronous>, transform_indices = @transform_3, window_bounds = array<i64: 128, 128>}, {pipeline_mode = #tpu.pipeline_mode<synchronous>, transform_indices = @transform_4, window_bounds = array<i64: 1, 128>}, {pipeline_mode = #tpu.pipeline_mode<synchronous>, transform_indices = @transform_5, window_bounds = array<i64: 128, 128>}, {pipeline_mode = #tpu.pipeline_mode<synchronous>, transform_indices = @transform_6, window_bounds = array<i64: 1, 128>}, {transform_indices = @transform_7, window_bounds = array<i64: 1, 128>}]} {
    %c0 = arith.constant 0 : index
    %c0_0 = arith.constant 0 : index
    %0 = vector.load %arg1[%c0, %c0_0] : memref<128x128xf32, #tpu.memory_space<vmem>>, vector<128x128xf32>
    %1 = arith.truncf %0 : vector<128x128xf32> to vector<128x128xbf16>
    %c0_1 = arith.constant 0 : index
    %c0_2 = arith.constant 0 : index
    %2 = vector.load %arg2[%c0_1, %c0_2] : memref<128x128xbf16, #tpu.memory_space<vmem>>, vector<128x128xbf16>
    %c0_3 = arith.constant 0 : index
    %c0_4 = arith.constant 0 : index
    %3 = vector.load %arg3[%c0_3, %c0_4] : memref<1x128xf32, #tpu.memory_space<vmem>>, vector<1x128xf32>
    %cst = arith.constant dense<0.000000e+00> : vector<128x128xf32>
    %4 = tpu.matmul %1, %2, %cst {dimension_numbers = #tpu.dot_dimension_numbers<[1], [0], [0], [1], [0, 0, 1, 1], [], []>} : vector<128x128xbf16>, vector<128x128xbf16>, vector<128x128xf32> -> vector<128x128xf32>
    %5 = vector.broadcast %3 : vector<1x128xf32> to vector<128x128xf32>
    %6 = arith.addf %4, %5 : vector<128x128xf32>
    %cst_5 = arith.constant 0.000000e+00 : f32
    %7 = vector.broadcast %cst_5 : f32 to vector<128x128xf32>
    %8 = arith.maximumf %6, %7 : vector<128x128xf32>
    %9 = arith.truncf %8 : vector<128x128xf32> to vector<128x128xbf16>
    %c0_6 = arith.constant 0 : index
    %c0_7 = arith.constant 0 : index
    %10 = vector.load %arg4[%c0_6, %c0_7] : memref<128x128xbf16, #tpu.memory_space<vmem>>, vector<128x128xbf16>
    %c0_8 = arith.constant 0 : index
    %c0_9 = arith.constant 0 : index
    %11 = vector.load %arg5[%c0_8, %c0_9] : memref<1x128xf32, #tpu.memory_space<vmem>>, vector<1x128xf32>
    %cst_10 = arith.constant dense<0.000000e+00> : vector<128x128xf32>
    %12 = tpu.matmul %9, %10, %cst_10 {dimension_numbers = #tpu.dot_dimension_numbers<[1], [0], [0], [1], [0, 0, 1, 1], [], []>} : vector<128x128xbf16>, vector<128x128xbf16>, vector<128x128xf32> -> vector<128x128xf32>
    %13 = vector.broadcast %11 : vector<1x128xf32> to vector<128x128xf32>
    %14 = arith.addf %12, %13 : vector<128x128xf32>
    %cst_11 = arith.constant 0.000000e+00 : f32
    %15 = vector.broadcast %cst_11 : f32 to vector<128x128xf32>
    %16 = arith.maximumf %14, %15 : vector<128x128xf32>
    %17 = arith.truncf %16 : vector<128x128xf32> to vector<128x128xbf16>
    %c0_12 = arith.constant 0 : index
    %c0_13 = arith.constant 0 : index
    %18 = vector.load %arg6[%c0_12, %c0_13] : memref<128x128xbf16, #tpu.memory_space<vmem>>, vector<128x128xbf16>
    %c0_14 = arith.constant 0 : index
    %c0_15 = arith.constant 0 : index
    %19 = vector.load %arg7[%c0_14, %c0_15] : memref<1x128xf32, #tpu.memory_space<vmem>>, vector<1x128xf32>
    %cst_16 = arith.constant dense<0.000000e+00> : vector<128x128xf32>
    %20 = tpu.matmul %17, %18, %cst_16 {dimension_numbers = #tpu.dot_dimension_numbers<[1], [0], [0], [1], [0, 0, 1, 1], [], []>} : vector<128x128xbf16>, vector<128x128xbf16>, vector<128x128xf32> -> vector<128x128xf32>
    %21 = vector.broadcast %19 : vector<1x128xf32> to vector<128x128xf32>
    %22 = arith.addf %20, %21 : vector<128x128xf32>
    %23 = tpu.transpose %22, [1, 0] : vector<128x128xf32> -> vector<128x128xf32>
    %24 = vector.extract_strided_slice %23 {offsets = [0, 0], sizes = [1, 128], strides = [1, 1]} : vector<128x128xf32> to vector<1x128xf32>
    %c0_17 = arith.constant 0 : index
    %c0_18 = arith.constant 0 : index
    %25 = vector.load %arg8[%c0_17, %c0_18] : memref<1x128xf32, #tpu.memory_space<vmem>>, vector<1x128xf32>
    tpu.vector_store %arg8[%c0_17, %c0_18], %24 {strides = array<i32>} : memref<1x128xf32, #tpu.memory_space<vmem>>, vector<1x128xf32>,
    return
  }
  func.func @transform_0(%arg0: i32) -> (i32, i32) {
    %c0_i32 = arith.constant 0 : i32
    %c0_i32_0 = arith.constant 0 : i32
    return %arg0, %c0_i32 : i32, i32
  }
  func.func @transform_1(%arg0: i32) -> (i32, i32) {
    %c0_i32 = arith.constant 0 : i32
    %c0_i32_0 = arith.constant 0 : i32
    %c0_i32_1 = arith.constant 0 : i32
    return %c0_i32, %c0_i32_0 : i32, i32
  }
  func.func @transform_2(%arg0: i32) -> (i32, i32) {
    %c0_i32 = arith.constant 0 : i32
    %c0_i32_0 = arith.constant 0 : i32
    %c0_i32_1 = arith.constant 0 : i32
    return %c0_i32, %c0_i32_0 : i32, i32
  }
  func.func @transform_3(%arg0: i32) -> (i32, i32) {
    %c0_i32 = arith.constant 0 : i32
    %c0_i32_0 = arith.constant 0 : i32
    %c0_i32_1 = arith.constant 0 : i32
    return %c0_i32, %c0_i32_0 : i32, i32
  }
  func.func @transform_4(%arg0: i32) -> (i32, i32) {
    %c0_i32 = arith.constant 0 : i32
    %c0_i32_0 = arith.constant 0 : i32
    %c0_i32_1 = arith.constant 0 : i32
    return %c0_i32, %c0_i32_0 : i32, i32
  }
  func.func @transform_5(%arg0: i32) -> (i32, i32) {
    %c0_i32 = arith.constant 0 : i32
    %c0_i32_0 = arith.constant 0 : i32
    %c0_i32_1 = arith.constant 0 : i32
    return %c0_i32, %c0_i32_0 : i32, i32
  }
  func.func @transform_6(%arg0: i32) -> (i32, i32) {
    %c0_i32 = arith.constant 0 : i32
    %c0_i32_0 = arith.constant 0 : i32
    %c0_i32_1 = arith.constant 0 : i32
    return %c0_i32, %c0_i32_0 : i32, i32
  }
  func.func @transform_7(%arg0: i32) -> (i32, i32) {
    %c0_i32 = arith.constant 0 : i32
    %c0_i32_0 = arith.constant 0 : i32
    return %c0_i32, %arg0 : i32, i32
  }
}

</mosaic_0001>

<llo_original>
// kernel: tasklayer_similarity.1
$region0: #{tasklayer_similarity.1}
  #allocation0 [shape = 'u32[]', space=smem, size = 0x4, offset = 0x4, fixed_abs, tag = 'smem constant byte address 0x4 - core index']
  #allocation1 [shape = 'u32[72,128]{1,0:T(1,128)}', space=vmem, size = 0x9000, scoped, tag = 'internal scratch']
  %s0 = inlined_call_operand.hbm [shape: f32[200,128], index: 0, kind: input, shape index: {}]
  %s1 = inlined_call_operand.hbm [shape: bf16[128,128], index: 1, kind: input, shape index: {}]
  %s2 = inlined_call_operand.vmem [shape: f32[1,128], index: 2, kind: input, shape index: {}]
  %s3 = inlined_call_operand.hbm [shape: bf16[128,128], index: 3, kind: input, shape index: {}]
  %s4 = inlined_call_operand.vmem [shape: f32[1,128], index: 4, kind: input, shape index: {}]
  %s5 = inlined_call_operand.hbm [shape: bf16[128,128], index: 5, kind: input, shape index: {}]
  %s6 = inlined_call_operand.vmem [shape: f32[1,128], index: 6, kind: input, shape index: {}]
  %s7 = inlined_call_operand.hbm [shape: f32[1,200], index: 7, kind: output, shape index: {}]
  %s8 = sld [smem:[#allocation0]]
  $region77: #{tasklayer_similarity.1} parent=0
    _
  %s10 = ssub.s32 1, %s8
  %s11 = scalar_select 0, %s10, %s8
  $region1: #{tasklayer_similarity.1} parent=0
    #allocation2 [shape = 'u8[131072]{0}', space=vmem, size = 0x20000, scoped, tag = 'input window, operand 0']
    #allocation3 [shape = 's32[2]{0}', space=sflag, size = 0x8, scoped, tag = 'scoped memory for tasklayer_similarity.1']
    #allocation4 [shape = 's32[2]{0}', space=sflag, size = 0x8, scoped, tag = 'scoped memory for tasklayer_similarity.1']
    #allocation5 [shape = 'u8[32768]{0}', space=vmem, size = 0x8000, scoped, tag = 'input window, operand 1, single buffered']
    #allocation6 [shape = 's32[1]{0}', space=sflag, size = 0x4, scoped, tag = 'scoped memory for tasklayer_similarity.1']
    #allocation7 [shape = 'u8[32768]{0}', space=vmem, size = 0x8000, scoped, tag = 'input window, operand 3, single buffered']
    #allocation8 [shape = 'u8[32768]{0}', space=vmem, size = 0x8000, scoped, tag = 'input window, operand 5, single buffered']
    #allocation9 [shape = 's32[1]{0}', space=sflag, size = 0x4, scoped, tag = 'scoped memory for tasklayer_similarity.1']
    #allocation10 [shape = 'u8[1024]{0}', space=vmem, size = 0x400, scoped, tag = 'output window, operand 0']
    %12 = vsyncpa [#allocation3], 0
    %s13 = scalar_lea.sflag [#allocation3], 1
    %14 = vsyncpa %s13, 0
    %15 = vsyncpa [#allocation6], 0
    %16 = vsyncpa [#allocation9], 0
    %17 = vsyncpa [#allocation4], 0
    %s18 = scalar_lea.sflag [#allocation4], 1
    %19 = vsyncpa %s18, 0
    loop: start=0, step=1, limit=4
    $region2: #{tasklayer_similarity.1} parent=1 // loop_pre_header
      _
    $region3: #{tasklayer_similarity.1} parent=1 // loop_header
      %s21 = sphi 0, %s25
      %p22 = scmp.ge.s32.totalorder %s21, 4
      %s31 = sphi 0, %s33
      %s34 = sphi 0, %s31
      %s35 = sphi 0, %s34
      %s51 = sphi 0, %s35
      %s55 = sphi 0, %s55
      %s57 = sphi 0, %s55
      %s58 = sphi 0, %s57
      %s72 = sphi 0, %s58
      %s76 = sphi 0, %s76
      %s78 = sphi 0, %s76
      %s79 = sphi 0, %s78
      %s93 = sphi 0, %s79
      %s97 = sphi 0, %s97
      %s99 = sphi 0, %s97
      %s100 = sphi 0, %s99
      %s114 = sphi 0, %s100
      %s118 = sphi 0, %s118
      %s120 = sphi 0, %s118
      %s121 = sphi 0, %s120
      %s135 = sphi 0, %s121
      %s139 = sphi 0, %s139
      %s141 = sphi 0, %s139
      %s142 = sphi 0, %s141
      %s156 = sphi 0, %s142
      %s160 = sphi 0, %s160
      %s162 = sphi 0, %s160
      %s163 = sphi 0, %s162
      %s177 = sphi 0, %s163
      %s183 = sphi 0, %s185
      %s186 = sphi 0, %s183
      %s187 = sphi 0, %s186
      %s203 = sphi 0, %s187
    $region4: #{tasklayer_similarity.1} parent=1 // loop_header_branch
      %24 = sbr.rel (%p22) target = $region8
    $region5: #{tasklayer_similarity.1} parent=1 // loop_body
      %s26 = ssub.s32 %s21, 1
      %s27 = ssub.s32 %s21, 2
      %s28 = sadd.s32 %s21, 1
      %s29 = ssub.s32 %s21, %s28
      %p30 = scmp.eq.s32.totalorder %s29, 0
      %s32 = sadd.s32 %s31, 1
      %s33 = scalar_select %p30, %s31, %s32
      %p36 = pneg %p30
      %p37 = scmp.eq.s32.totalorder %s21, 1
      %p38 = por %p36, %p37
      %p39 = scmp.ne.s32.totalorder %s31, %s34
      %p40 = scmp.eq.s32.totalorder %s21, 0
      %p41 = por %p39, %p40
      %p42 = scmp.ne.s32.totalorder %s31, %s34
      %p43 = scmp.eq.s32.totalorder %s26, 1
      %p44 = por %p42, %p43
      %p45 = scmp.ne.s32.totalorder %s34, %s35
      %p46 = scmp.eq.s32.totalorder %s26, 0
      %p47 = por %p45, %p46
      %p48 = scmp.ne.s32.totalorder %s34, %s35
      %p49 = scmp.eq.s32.totalorder %s27, 1
      %p50 = por %p48, %p49
      %p52 = scmp.ne.s32.totalorder %s35, %s51
      %p53 = scmp.eq.s32.totalorder %s27, 0
      %p54 = por %p52, %p53
      %s56 = sadd.s32 %s55, 1
      %p59 = scmp.eq.s32.totalorder %s21, 1
      %p60 = scmp.ne.s32.totalorder %s55, %s57
      %p61 = scmp.eq.s32.totalorder %s21, 0
      %p62 = por %p60, %p61
      %p63 = scmp.ne.s32.totalorder %s55, %s57
      %p64 = scmp.eq.s32.totalorder %s26, 1
      %p65 = por %p63, %p64
      %p66 = scmp.ne.s32.totalorder %s57, %s58
      %p67 = scmp.eq.s32.totalorder %s26, 0
      %p68 = por %p66, %p67
      %p69 = scmp.ne.s32.totalorder %s57, %s58
      %p70 = scmp.eq.s32.totalorder %s27, 1
      %p71 = por %p69, %p70
      %p73 = scmp.ne.s32.totalorder %s58, %s72
      %p74 = scmp.eq.s32.totalorder %s27, 0
      %p75 = por %p73, %p74
      %s77 = sadd.s32 %s76, 1
      %p80 = scmp.eq.s32.totalorder %s21, 1
      %p81 = scmp.ne.s32.totalorder %s76, %s78
      %p82 = scmp.eq.s32.totalorder %s21, 0
      %p83 = por %p81, %p82
      %p84 = scmp.ne.s32.totalorder %s76, %s78
      %p85 = scmp.eq.s32.totalorder %s26, 1
      %p86 = por %p84, %p85
      %p87 = scmp.ne.s32.totalorder %s78, %s79
      %p88 = scmp.eq.s32.totalorder %s26, 0
      %p89 = por %p87, %p88
      %p90 = scmp.ne.s32.totalorder %s78, %s79
      %p91 = scmp.eq.s32.totalorder %s27, 1
      %p92 = por %p90, %p91
      %p94 = scmp.ne.s32.totalorder %s79, %s93
      %p95 = scmp.eq.s32.totalorder %s27, 0
      %p96 = por %p94, %p95
      %s98 = sadd.s32 %s97, 1
      %p101 = scmp.eq.s32.totalorder %s21, 1
      %p102 = scmp.ne.s32.totalorder %s97, %s99
      %p103 = scmp.eq.s32.totalorder %s21, 0
      %p104 = por %p102, %p103
      %p105 = scmp.ne.s32.totalorder %s97, %s99
      %p106 = scmp.eq.s32.totalorder %s26, 1
      %p107 = por %p105, %p106
      %p108 = scmp.ne.s32.totalorder %s99, %s100
      %p109 = scmp.eq.s32.totalorder %s26, 0
      %p110 = por %p108, %p109
      %p111 = scmp.ne.s32.totalorder %s99, %s100
      %p112 = scmp.eq.s32.totalorder %s27, 1
      %p113 = por %p111, %p112
      %p115 = scmp.ne.s32.totalorder %s100, %s114
      %p116 = scmp.eq.s32.totalorder %s27, 0
      %p117 = por %p115, %p116
      %s119 = sadd.s32 %s118, 1
      %p122 = scmp.eq.s32.totalorder %s21, 1
      %p123 = scmp.ne.s32.totalorder %s118, %s120
      %p124 = scmp.eq.s32.totalorder %s21, 0
      %p125 = por %p123, %p124
      %p126 = scmp.ne.s32.totalorder %s118, %s120
      %p127 = scmp.eq.s32.totalorder %s26, 1
      %p128 = por %p126, %p127
      %p129 = scmp.ne.s32.totalorder %s120, %s121
      %p130 = scmp.eq.s32.totalorder %s26, 0
      %p131 = por %p129, %p130
      %p132 = scmp.ne.s32.totalorder %s120, %s121
      %p133 = scmp.eq.s32.totalorder %s27, 1
      %p134 = por %p132, %p133
      %p136 = scmp.ne.s32.totalorder %s121, %s135
      %p137 = scmp.eq.s32.totalorder %s27, 0
      %p138 = por %p136, %p137
      %s140 = sadd.s32 %s139, 1
      %p143 = scmp.eq.s32.totalorder %s21, 1
      %p144 = scmp.ne.s32.totalorder %s139, %s141
      %p145 = scmp.eq.s32.totalorder %s21, 0
      %p146 = por %p144, %p145
      %p147 = scmp.ne.s32.totalorder %s139, %s141
      %p148 = scmp.eq.s32.totalorder %s26, 1
      %p149 = por %p147, %p148
      %p150 = scmp.ne.s32.totalorder %s141, %s142
      %p151 = scmp.eq.s32.totalorder %s26, 0
      %p152 = por %p150, %p151
      %p153 = scmp.ne.s32.totalorder %s141, %s142
      %p154 = scmp.eq.s32.totalorder %s27, 1
      %p155 = por %p153, %p154
      %p157 = scmp.ne.s32.totalorder %s142, %s156
      %p158 = scmp.eq.s32.totalorder %s27, 0
      %p159 = por %p157, %p158
      %s161 = sadd.s32 %s160, 1
      %p164 = scmp.eq.s32.totalorder %s21, 1
      %p165 = scmp.ne.s32.totalorder %s160, %s162
      %p166 = scmp.eq.s32.totalorder %s21, 0
      %p167 = por %p165, %p166
      %p168 = scmp.ne.s32.totalorder %s160, %s162
      %p169 = scmp.eq.s32.totalorder %s26, 1
      %p170 = por %p168, %p169
      %p171 = scmp.ne.s32.totalorder %s162, %s163
      %p172 = scmp.eq.s32.totalorder %s26, 0
      %p173 = por %p171, %p172
      %p174 = scmp.ne.s32.totalorder %s162, %s163
      %p175 = scmp.eq.s32.totalorder %s27, 1
      %p176 = por %p174, %p175
      %p178 = scmp.ne.s32.totalorder %s163, %s177
      %p179 = scmp.eq.s32.totalorder %s27, 0
      %p180 = por %p178, %p179
      %s181 = ssub.s32 %s21, %s28
      %p182 = scmp.eq.s32.totalorder %s181, 0
      %s184 = sadd.s32 %s183, 1
      %s185 = scalar_select %p182, %s183, %s184
      %p188 = pneg %p182
      %p189 = scmp.eq.s32.totalorder %s21, 1
      %p190 = por %p188, %p189
      %p191 = scmp.ne.s32.totalorder %s183, %s186
      %p192 = scmp.eq.s32.totalorder %s21, 0
      %p193 = por %p191, %p192
      %p194 = scmp.ne.s32.totalorder %s183, %s186
      %p195 = scmp.eq.s32.totalorder %s26, 1
      %p196 = por %p194, %p195
      %p197 = scmp.ne.s32.totalorder %s186, %s187
      %p198 = scmp.eq.s32.totalorder %s26, 0
      %p199 = por %p197, %p198
      %p200 = scmp.ne.s32.totalorder %s186, %s187
      %p201 = scmp.eq.s32.totalorder %s27, 1
      %p202 = por %p200, %p201
      %p204 = scmp.ne.s32.totalorder %s187, %s203
      %p205 = scmp.eq.s32.totalorder %s27, 0
      %p206 = por %p204, %p205
      %p207 = scmp.le.s32.totalorder 1, %s21
      %p208 = scmp.lt.s32.totalorder %s21, 3
      %p209 = pnand %p207, %p208
      %p210 = pneg %p209
      // Predicated region
      $region9: #{tasklayer_similarity.1} parent=5 // pred_check
        _
      $region10: #{tasklayer_similarity.1} parent=5 // pred_check_branch
        %212 = sbr.rel (%p209) target = $region12
      $region11: #{tasklayer_similarity.1} parent=5 // pred_region
        %s213 = ssub.s32 %s21, 1
        // Predicated region
        $region13: #{tasklayer_similarity.1} parent=11 // pred_check
          %p214 = pneg %p68
        $region14: #{tasklayer_similarity.1} parent=11 // pred_check_branch
          %216 = sbr.rel (%p214) target = $region16
        $region15: #{tasklayer_similarity.1} parent=11 // pred_region
          %218 = vsyncadd [#allocation6], 0
          %s219 = sshll.u32 %s1, 4
          %s220 = int_to_ptr.hbm [resolvable:$true] %s219
          %s221 = sshll.u32 [#allocation5], 4
          %s222 = int_to_ptr.vmem [resolvable:$true] %s221
          %227 = dma.hbm_to_vmem [thread:$0]  %s220, 1024, %s222, [#allocation6], 64, 64, 4
        $region16: #{tasklayer_similarity.1} parent=11 // pred_fallthru
          _
        // Predicated region
        $region17: #{tasklayer_similarity.1} parent=11 // pred_check
          %p228 = pneg %p89
        $region18: #{tasklayer_similarity.1} parent=11 // pred_check_branch
          %230 = sbr.rel (%p228) target = $region20
        $region19: #{tasklayer_similarity.1} parent=11 // pred_region
          _
        $region20: #{tasklayer_similarity.1} parent=11 // pred_fallthru
          _
        // Predicated region
        $region21: #{tasklayer_similarity.1} parent=11 // pred_check
          %p231 = pneg %p110
        $region22: #{tasklayer_similarity.1} parent=11 // pred_check_branch
          %233 = sbr.rel (%p231) target = $region24
        $region23: #{tasklayer_similarity.1} parent=11 // pred_region
          %235 = vsyncadd [#allocation6], 0
          %s236 = sshll.u32 %s3, 4
          %s237 = int_to_ptr.hbm [resolvable:$true] %s236
          %s238 = sshll.u32 [#allocation7], 4
          %s239 = int_to_ptr.vmem [resolvable:$true] %s238
          %244 = dma.hbm_to_vmem [thread:$0]  %s237, 1024, %s239, [#allocation6], 64, 64, 4
        $region24: #{tasklayer_similarity.1} parent=11 // pred_fallthru
          _
        // Predicated region
        $region25: #{tasklayer_similarity.1} parent=11 // pred_check
          %p245 = pneg %p131
        $region26: #{tasklayer_similarity.1} parent=11 // pred_check_branch
          %247 = sbr.rel (%p245) target = $region28
        $region27: #{tasklayer_similarity.1} parent=11 // pred_region
          _
        $region28: #{tasklayer_similarity.1} parent=11 // pred_fallthru
          _
        // Predicated region
        $region29: #{tasklayer_similarity.1} parent=11 // pred_check
          %p248 = pneg %p152
        $region30: #{tasklayer_similarity.1} parent=11 // pred_check_branch
          %250 = sbr.rel (%p248) target = $region32
        $region31: #{tasklayer_similarity.1} parent=11 // pred_region
          %252 = vsyncadd [#allocation9], 0
          %s253 = sshll.u32 %s5, 4
          %s254 = int_to_ptr.hbm [resolvable:$true] %s253
          %s255 = sshll.u32 [#allocation8], 4
          %s256 = int_to_ptr.vmem [resolvable:$true] %s255
          %261 = dma.hbm_to_vmem [thread:$0]  %s254, 1024, %s256, [#allocation9], 64, 64, 4
        $region32: #{tasklayer_similarity.1} parent=11 // pred_fallthru
          _
        // Predicated region
        $region33: #{tasklayer_similarity.1} parent=11 // pred_check
          %p262 = pneg %p173
        $region34: #{tasklayer_similarity.1} parent=11 // pred_check_branch
          %264 = sbr.rel (%p262) target = $region36
        $region35: #{tasklayer_similarity.1} parent=11 // pred_region
          _
        $region36: #{tasklayer_similarity.1} parent=11 // pred_fallthru
          _
      $region12: #{tasklayer_similarity.1} parent=5 // pred_fallthru
        _
      %p265 = scmp.lt.s32.totalorder %s21, 2
      // Predicated region
      $region37: #{tasklayer_similarity.1} parent=5 // pred_check
        %p266 = pneg %p265
      $region38: #{tasklayer_similarity.1} parent=5 // pred_check_branch
        %268 = sbr.rel (%p266) target = $region40
      $region39: #{tasklayer_similarity.1} parent=5 // pred_region
        // Predicated region
        $region41: #{tasklayer_similarity.1} parent=39 // pred_check
          %p269 = pneg %p41
        $region42: #{tasklayer_similarity.1} parent=39 // pred_check_branch
          %271 = sbr.rel (%p269) target = $region44
        $region43: #{tasklayer_similarity.1} parent=39 // pred_region
          %s272 = sand.u32 %s31, 1
          %s273 = scalar_lea.sflag [#allocation3], %s272
          %s274 = sand.u32 %s31, 1
          %s275 = smul.addr %s274, 128
          %s276 = scalar_lea.vmem [#allocation2], %s275
          %s277 = smul.u32 16, %s21
          %s278 = ssub.s32 25, %s277
          %p279 = scmp.lt.s32.totalorder %s278, 16
          %s280 = scalar_select %p279, %s278, 16
          %s281 = smul.u32 8, %s280
          %s282 = ssub.s32 128, %s281
          %s283 = sshll.u32 %s282, 4
          %284 = vsyncadd %s273, %s283
          %p285 = scmp.ne.s32.totalorder 0, %s281
          %s286 = smul.addr %s277, 8
          %s287 = scalar_lea.hbm %s0, %s286
          %s288 = smul.u32 8, %s280
          %s289 = sshll.u32 %s287, 4
          %s290 = int_to_ptr.hbm [resolvable:$true] %s289
          %s291 = sshll.u32 %s276, 4
          %s292 = int_to_ptr.vmem [resolvable:$true] %s291
          %s293 = sshll.u32 %s288, 4
          %297 = dma.hbm_to_vmem [thread:$0]  (%p285), %s290, %s293, %s292, %s273, 128, 128, 8
        $region44: #{tasklayer_similarity.1} parent=39 // pred_fallthru
          _
      $region40: #{tasklayer_similarity.1} parent=5 // pred_fallthru
        _
      %p298 = scmp.le.s32.totalorder 1, %s21
      %p299 = scmp.lt.s32.totalorder %s21, 3
      %p300 = pnand %p298, %p299
      %p301 = pneg %p300
      // Predicated region
      $region45: #{tasklayer_similarity.1} parent=5 // pred_check
        _
      $region46: #{tasklayer_similarity.1} parent=5 // pred_check_branch
        %303 = sbr.rel (%p300) target = $region48
      $region47: #{tasklayer_similarity.1} parent=5 // pred_region
        %s304 = ssub.s32 %s21, 1
        %s305 = sand.u32 %s34, 1
        %s306 = scalar_lea.sflag [#allocation3], %s305
        %s307 = sand.u32 %s34, 1
        %s308 = smul.addr %s307, 128
        %s309 = scalar_lea.vmem [#allocation2], %s308
        // Predicated region
        $region49: #{tasklayer_similarity.1} parent=47 // pred_check
          %p310 = pneg %p47
        $region50: #{tasklayer_similarity.1} parent=47 // pred_check_branch
          %312 = sbr.rel (%p310) target = $region52
        $region51: #{tasklayer_similarity.1} parent=47 // pred_region
          %314 = dma.done %s306, 2048
        $region52: #{tasklayer_similarity.1} parent=47 // pred_fallthru
          _
        // Predicated region
        $region53: #{tasklayer_similarity.1} parent=47 // pred_check
          %p315 = pneg %p68
        $region54: #{tasklayer_similarity.1} parent=47 // pred_check_branch
          %317 = sbr.rel (%p315) target = $region56
        $region55: #{tasklayer_similarity.1} parent=47 // pred_region
          %319 = dma.done [#allocation6], 1024
        $region56: #{tasklayer_similarity.1} parent=47 // pred_fallthru
          _
        // Predicated region
        $region57: #{tasklayer_similarity.1} parent=47 // pred_check
          %p320 = pneg %p110
        $region58: #{tasklayer_similarity.1} parent=47 // pred_check_branch
          %322 = sbr.rel (%p320) target = $region60
        $region59: #{tasklayer_similarity.1} parent=47 // pred_region
          %324 = dma.done [#allocation6], 1024
        $region60: #{tasklayer_similarity.1} parent=47 // pred_fallthru
          _
        // Predicated region
        $region61: #{tasklayer_similarity.1} parent=47 // pred_check
          %p325 = pneg %p152
        $region62: #{tasklayer_similarity.1} parent=47 // pred_check_branch
          %327 = sbr.rel (%p325) target = $region64
        $region63: #{tasklayer_similarity.1} parent=47 // pred_region
          %329 = dma.done [#allocation9], 1024
        $region64: #{tasklayer_similarity.1} parent=47 // pred_fallthru
          _
        %s330 = sand.u32 %s34, 1
        %s331 = scalar_lea.sflag [#allocation3], %s330
        %s332 = sand.u32 %s34, 1
        %s333 = smul.addr %s332, 128
        %s334 = scalar_lea.vmem [#allocation2], %s333
        %p335 = pneg %p47
        %p336 = pneg %p44
        %p337 = pneg %p68
        %p338 = pneg %p65
        %p339 = pneg %p89
        %p340 = pneg %p86
        %p341 = pneg %p110
        %p342 = pneg %p107
        %p343 = pneg %p131
        %p344 = pneg %p128
        %p345 = pneg %p152
        %p346 = pneg %p149
        %p347 = pneg %p173
        %p348 = pneg %p170
        %p349 = pneg %p199
        %p350 = pneg %p196
        %s351 = sand.u32 %s186, 1
        %s352 = scalar_lea.sflag [#allocation4], %s351
        %s353 = sand.u32 %s186, 1
        %s354 = scalar_lea.vmem [#allocation10], %s353
        %s355 = smul.u32 16, %s26
        %s356 = ssub.s32 25, %s355
        %p357 = scmp.lt.s32.totalorder %s356, 16
        %s358 = scalar_select %p357, %s356, 16
        %s359 = smul.u32 8, %s358
        %v360 = vld [vmem:[%s309] sm:$0xff]
        %v361 = vld [vmem:[%s309 + $0x8] sm:$0xff]
        %v362 = vld [vmem:[%s309 + $0x10] sm:$0xff]
        %v363 = vld [vmem:[%s309 + $0x18] sm:$0xff]
        %v364 = vld [vmem:[%s309 + $0x20] sm:$0xff]
        %v365 = vld [vmem:[%s309 + $0x28] sm:$0xff]
        %v366 = vld [vmem:[%s309 + $0x30] sm:$0xff]
        %v367 = vld [vmem:[%s309 + $0x38] sm:$0xff]
        %v368 = vld [vmem:[%s309 + $0x40] sm:$0xff]
        %v369 = vld [vmem:[%s309 + $0x48] sm:$0xff]
        %v370 = vld [vmem:[%s309 + $0x50] sm:$0xff]
        %v371 = vld [vmem:[%s309 + $0x58] sm:$0xff]
        %v372 = vld [vmem:[%s309 + $0x60] sm:$0xff]
        %v373 = vld [vmem:[%s309 + $0x68] sm:$0xff]
        %v374 = vld [vmem:[%s309 + $0x70] sm:$0xff]
        %v375 = vld [vmem:[%s309 + $0x78] sm:$0xff]
        %v376 = vpack.c.bf16 %v361, %v360
        %v377 = vpack.c.bf16 %v363, %v362
        %v378 = vpack.c.bf16 %v365, %v364
        %v379 = vpack.c.bf16 %v367, %v366
        %v380 = vpack.c.bf16 %v369, %v368
        %v381 = vpack.c.bf16 %v371, %v370
        %v382 = vpack.c.bf16 %v373, %v372
        %v383 = vpack.c.bf16 %v375, %v374
        %v384 = vld [vmem:[#allocation5] sm:$0xf]
        %v385 = vld [vmem:[#allocation5 + $0x4] sm:$0xf]
        %v386 = vld [vmem:[#allocation5 + $0x8] sm:$0xf]
        %v387 = vld [vmem:[#allocation5 + $0xc] sm:$0xf]
        %v388 = vld [vmem:[#allocation5 + $0x10] sm:$0xf]
        %v389 = vld [vmem:[#allocation5 + $0x14] sm:$0xf]
        %v390 = vld [vmem:[#allocation5 + $0x18] sm:$0xf]
        %v391 = vld [vmem:[#allocation5 + $0x1c] sm:$0xf]
        %v392 = vld [vmem:[#allocation5 + $0x20] sm:$0xf]
        %v393 = vld [vmem:[#allocation5 + $0x24] sm:$0xf]
        %v394 = vld [vmem:[#allocation5 + $0x28] sm:$0xf]
        %v395 = vld [vmem:[#allocation5 + $0x2c] sm:$0xf]
        %v396 = vld [vmem:[#allocation5 + $0x30] sm:$0xf]
        %v397 = vld [vmem:[#allocation5 + $0x34] sm:$0xf]
        %v398 = vld [vmem:[#allocation5 + $0x38] sm:$0xf]
        %v399 = vld [vmem:[#allocation5 + $0x3c] sm:$0xf]
        %v400 = vld [vmem:[%s2] sm:$0x1]
        %v402 = vperm.slane %v400, 0
        %v420 = vunpack.c.l.b16 %v384
        %v421 = vunpack.c.l.b16 %v385
        %v422 = vunpack.c.l.b16 %v386
        %v423 = vunpack.c.l.b16 %v387
        %v424 = vunpack.c.l.b16 %v388
        %v425 = vunpack.c.l.b16 %v389
        %v426 = vunpack.c.l.b16 %v390
        %v427 = vunpack.c.l.b16 %v391
        %v428 = vunpack.c.l.b16 %v392
        %v429 = vunpack.c.l.b16 %v393
        %v430 = vunpack.c.l.b16 %v394
        %v431 = vunpack.c.l.b16 %v395
        %v432 = vunpack.c.l.b16 %v396
        %v433 = vunpack.c.l.b16 %v397
        %v434 = vunpack.c.l.b16 %v398
        %v435 = vunpack.c.l.b16 %v399
        %v436 = vpack.c.b16 %v421, %v420
        %v437 = vpack.c.b16 %v423, %v422
        %v438 = vpack.c.b16 %v425, %v424
        %v439 = vpack.c.b16 %v427, %v426
        %v440 = vpack.c.b16 %v429, %v428
        %v441 = vpack.c.b16 %v431, %v430
        %v442 = vpack.c.b16 %v433, %v432
        %v443 = vpack.c.b16 %v435, %v434
        %452 = vmatpush.bf16.msra.mxu0 %v443
        %453 = vmatpush.bf16.msra.mxu0 %v442
        %454 = vmatpush.bf16.msra.mxu0 %v441
        %455 = vmatpush.bf16.msra.mxu0 %v440
        %456 = vmatpush.bf16.msra.mxu0 %v439
        %457 = vmatpush.bf16.msra.mxu0 %v438
        %458 = vmatpush.bf16.msra.mxu0 %v437
        %459 = vmatpush.bf16.msra.mxu0 %v436
        %460 = vmatmul.bf16.gmra.mxu0 %v376
        %v461 = vpop.f32.mrf.mxu0
        %v462 = vadd.f32 %v402, %v461
        %v463 = vpop.f32.mrf.mxu0
        %v464 = vadd.f32 %v402, %v463
        %465 = vmatmul.bf16.gmra.mxu0 %v377
        %v466 = vpop.f32.mrf.mxu0
        %v467 = vadd.f32 %v402, %v466
        %v468 = vpop.f32.mrf.mxu0
        %v469 = vadd.f32 %v402, %v468
        %470 = vmatmul.bf16.gmra.mxu0 %v378
        %v471 = vpop.f32.mrf.mxu0
        %v472 = vadd.f32 %v402, %v471
        %v473 = vpop.f32.mrf.mxu0
        %v474 = vadd.f32 %v402, %v473
        %475 = vmatmul.bf16.gmra.mxu0 %v379
        %v476 = vpop.f32.mrf.mxu0
        %v477 = vadd.f32 %v402, %v476
        %v478 = vpop.f32.mrf.mxu0
        %v479 = vadd.f32 %v402, %v478
        %480 = vmatmul.bf16.gmra.mxu0 %v380
        %v481 = vpop.f32.mrf.mxu0
        %v482 = vadd.f32 %v402, %v481
        %v483 = vpop.f32.mrf.mxu0
        %v484 = vadd.f32 %v402, %v483
        %485 = vmatmul.bf16.gmra.mxu0 %v381
        %v486 = vpop.f32.mrf.mxu0
        %v487 = vadd.f32 %v402, %v486
        %v488 = vpop.f32.mrf.mxu0
        %v489 = vadd.f32 %v402, %v488
        %490 = vmatmul.bf16.gmra.mxu0 %v382
        %v491 = vpop.f32.mrf.mxu0
        %v492 = vadd.f32 %v402, %v491
        %v493 = vpop.f32.mrf.mxu0
        %v494 = vadd.f32 %v402, %v493
        %495 = vmatmul.bf16.gmra.mxu0 %v383
        %v496 = vpop.f32.mrf.mxu0
        %v497 = vadd.f32 %v402, %v496
        %v498 = vpop.f32.mrf.mxu0
        %v499 = vadd.f32 %v402, %v498
        %500 = vdwg.mxu0
        %v501 = vmax.f32 %v462, 0.0
        %v502 = vmax.f32 %v464, 0.0
        %v503 = vmax.f32 %v467, 0.0
        %v504 = vmax.f32 %v469, 0.0
        %v505 = vmax.f32 %v472, 0.0
        %v506 = vmax.f32 %v474, 0.0
        %v507 = vmax.f32 %v477, 0.0
        %v508 = vmax.f32 %v479, 0.0
        %v509 = vmax.f32 %v482, 0.0
        %v510 = vmax.f32 %v484, 0.0
        %v511 = vmax.f32 %v487, 0.0
        %v512 = vmax.f32 %v489, 0.0
        %v513 = vmax.f32 %v492, 0.0
        %v514 = vmax.f32 %v494, 0.0
        %v515 = vmax.f32 %v497, 0.0
        %v516 = vmax.f32 %v499, 0.0
        %v517 = vpack.c.bf16 %v502, %v501
        %v518 = vpack.c.bf16 %v504, %v503
        %v519 = vpack.c.bf16 %v506, %v505
        %v520 = vpack.c.bf16 %v508, %v507
        %v521 = vpack.c.bf16 %v510, %v509
        %v522 = vpack.c.bf16 %v512, %v511
        %v523 = vpack.c.bf16 %v514, %v513
        %v524 = vpack.c.bf16 %v516, %v515
        %v525 = vld [vmem:[#allocation7] sm:$0xf]
        %v526 = vld [vmem:[#allocation7 + $0x4] sm:$0xf]
        %v527 = vld [vmem:[#allocation7 + $0x8] sm:$0xf]
        %v528 = vld [vmem:[#allocation7 + $0xc] sm:$0xf]
        %v529 = vld [vmem:[#allocation7 + $0x10] sm:$0xf]
        %v530 = vld [vmem:[#allocation7 + $0x14] sm:$0xf]
        %v531 = vld [vmem:[#allocation7 + $0x18] sm:$0xf]
        %v532 = vld [vmem:[#allocation7 + $0x1c] sm:$0xf]
        %v533 = vld [vmem:[#allocation7 + $0x20] sm:$0xf]
        %v534 = vld [vmem:[#allocation7 + $0x24] sm:$0xf]
        %v535 = vld [vmem:[#allocation7 + $0x28] sm:$0xf]
        %v536 = vld [vmem:[#allocation7 + $0x2c] sm:$0xf]
        %v537 = vld [vmem:[#allocation7 + $0x30] sm:$0xf]
        %v538 = vld [vmem:[#allocation7 + $0x34] sm:$0xf]
        %v539 = vld [vmem:[#allocation7 + $0x38] sm:$0xf]
        %v540 = vld [vmem:[#allocation7 + $0x3c] sm:$0xf]
        %v541 = vld [vmem:[%s4] sm:$0x1]
        %v543 = vperm.slane %v541, 0
        %v561 = vunpack.c.l.b16 %v525
        %v562 = vunpack.c.l.b16 %v526
        %v563 = vunpack.c.l.b16 %v527
        %v564 = vunpack.c.l.b16 %v528
        %v565 = vunpack.c.l.b16 %v529
        %v566 = vunpack.c.l.b16 %v530
        %v567 = vunpack.c.l.b16 %v531
        %v568 = vunpack.c.l.b16 %v532
        %v569 = vunpack.c.l.b16 %v533
        %v570 = vunpack.c.l.b16 %v534
        %v571 = vunpack.c.l.b16 %v535
        %v572 = vunpack.c.l.b16 %v536
        %v573 = vunpack.c.l.b16 %v537
        %v574 = vunpack.c.l.b16 %v538
        %v575 = vunpack.c.l.b16 %v539
        %v576 = vunpack.c.l.b16 %v540
        %v577 = vpack.c.b16 %v562, %v561
        %v578 = vpack.c.b16 %v564, %v563
        %v579 = vpack.c.b16 %v566, %v565
        %v580 = vpack.c.b16 %v568, %v567
        %v581 = vpack.c.b16 %v570, %v569
        %v582 = vpack.c.b16 %v572, %v571
        %v583 = vpack.c.b16 %v574, %v573
        %v584 = vpack.c.b16 %v576, %v575
        %593 = vmatpush.bf16.msra.mxu0 %v584
        %594 = vmatpush.bf16.msra.mxu0 %v583
        %595 = vmatpush.bf16.msra.mxu0 %v582
        %596 = vmatpush.bf16.msra.mxu0 %v581
        %597 = vmatpush.bf16.msra.mxu0 %v580
        %598 = vmatpush.bf16.msra.mxu0 %v579
        %599 = vmatpush.bf16.msra.mxu0 %v578
        %600 = vmatpush.bf16.msra.mxu0 %v577
        %601 = vmatmul.bf16.gmra.mxu0 %v517
        %v602 = vpop.f32.mrf.mxu0
        %v603 = vadd.f32 %v543, %v602
        %v604 = vpop.f32.mrf.mxu0
        %v605 = vadd.f32 %v543, %v604
        %606 = vmatmul.bf16.gmra.mxu0 %v518
        %v607 = vpop.f32.mrf.mxu0
        %v608 = vadd.f32 %v543, %v607
        %v609 = vpop.f32.mrf.mxu0
        %v610 = vadd.f32 %v543, %v609
        %611 = vmatmul.bf16.gmra.mxu0 %v519
        %v612 = vpop.f32.mrf.mxu0
        %v613 = vadd.f32 %v543, %v612
        %v614 = vpop.f32.mrf.mxu0
        %v615 = vadd.f32 %v543, %v614
        %616 = vmatmul.bf16.gmra.mxu0 %v520
        %v617 = vpop.f32.mrf.mxu0
        %v618 = vadd.f32 %v543, %v617
        %v619 = vpop.f32.mrf.mxu0
        %v620 = vadd.f32 %v543, %v619
        %621 = vmatmul.bf16.gmra.mxu0 %v521
        %v622 = vpop.f32.mrf.mxu0
        %v623 = vadd.f32 %v543, %v622
        %v624 = vpop.f32.mrf.mxu0
        %v625 = vadd.f32 %v543, %v624
        %626 = vmatmul.bf16.gmra.mxu0 %v522
        %v627 = vpop.f32.mrf.mxu0
        %v628 = vadd.f32 %v543, %v627
        %v629 = vpop.f32.mrf.mxu0
        %v630 = vadd.f32 %v543, %v629
        %631 = vmatmul.bf16.gmra.mxu0 %v523
        %v632 = vpop.f32.mrf.mxu0
        %v633 = vadd.f32 %v543, %v632
        %v634 = vpop.f32.mrf.mxu0
        %v635 = vadd.f32 %v543, %v634
        %636 = vmatmul.bf16.gmra.mxu0 %v524
        %v637 = vpop.f32.mrf.mxu0
        %v638 = vadd.f32 %v543, %v637
        %v639 = vpop.f32.mrf.mxu0
        %v640 = vadd.f32 %v543, %v639
        %641 = vdwg.mxu0
        %v642 = vmax.f32 %v603, 0.0
        %v643 = vmax.f32 %v605, 0.0
        %v644 = vmax.f32 %v608, 0.0
        %v645 = vmax.f32 %v610, 0.0
        %v646 = vmax.f32 %v613, 0.0
        %v647 = vmax.f32 %v615, 0.0
        %v648 = vmax.f32 %v618, 0.0
        %v649 = vmax.f32 %v620, 0.0
        %v650 = vmax.f32 %v623, 0.0
        %v651 = vmax.f32 %v625, 0.0
        %v652 = vmax.f32 %v628, 0.0
        %v653 = vmax.f32 %v630, 0.0
        %v654 = vmax.f32 %v633, 0.0
        %v655 = vmax.f32 %v635, 0.0
        %v656 = vmax.f32 %v638, 0.0
        %v657 = vmax.f32 %v640, 0.0
        %v658 = vpack.c.bf16 %v643, %v642
        %v659 = vpack.c.bf16 %v645, %v644
        %v660 = vpack.c.bf16 %v647, %v646
        %v661 = vpack.c.bf16 %v649, %v648
        %v662 = vpack.c.bf16 %v651, %v650
        %v663 = vpack.c.bf16 %v653, %v652
        %v664 = vpack.c.bf16 %v655, %v654
        %v665 = vpack.c.bf16 %v657, %v656
        %v666 = vld [vmem:[#allocation8] sm:$0xf]
        %v667 = vld [vmem:[#allocation8 + $0x4] sm:$0xf]
        %v668 = vld [vmem:[#allocation8 + $0x8] sm:$0xf]
        %v669 = vld [vmem:[#allocation8 + $0xc] sm:$0xf]
        %v670 = vld [vmem:[#allocation8 + $0x10] sm:$0xf]
        %v671 = vld [vmem:[#allocation8 + $0x14] sm:$0xf]
        %v672 = vld [vmem:[#allocation8 + $0x18] sm:$0xf]
        %v673 = vld [vmem:[#allocation8 + $0x1c] sm:$0xf]
        %v674 = vld [vmem:[#allocation8 + $0x20] sm:$0xf]
        %v675 = vld [vmem:[#allocation8 + $0x24] sm:$0xf]
        %v676 = vld [vmem:[#allocation8 + $0x28] sm:$0xf]
        %v677 = vld [vmem:[#allocation8 + $0x2c] sm:$0xf]
        %v678 = vld [vmem:[#allocation8 + $0x30] sm:$0xf]
        %v679 = vld [vmem:[#allocation8 + $0x34] sm:$0xf]
        %v680 = vld [vmem:[#allocation8 + $0x38] sm:$0xf]
        %v681 = vld [vmem:[#allocation8 + $0x3c] sm:$0xf]
        %v682 = vld [vmem:[%s6] sm:$0x1]
        %v684 = vperm.slane %v682, 0
        %v702 = vunpack.c.l.b16 %v666
        %v703 = vunpack.c.l.b16 %v667
        %v704 = vunpack.c.l.b16 %v668
        %v705 = vunpack.c.l.b16 %v669
        %v706 = vunpack.c.l.b16 %v670
        %v707 = vunpack.c.l.b16 %v671
        %v708 = vunpack.c.l.b16 %v672
        %v709 = vunpack.c.l.b16 %v673
        %v710 = vunpack.c.l.b16 %v674
        %v711 = vunpack.c.l.b16 %v675
        %v712 = vunpack.c.l.b16 %v676
        %v713 = vunpack.c.l.b16 %v677
        %v714 = vunpack.c.l.b16 %v678
        %v715 = vunpack.c.l.b16 %v679
        %v716 = vunpack.c.l.b16 %v680
        %v717 = vunpack.c.l.b16 %v681
        %v718 = vpack.c.b16 %v703, %v702
        %v719 = vpack.c.b16 %v705, %v704
        %v720 = vpack.c.b16 %v707, %v706
        %v721 = vpack.c.b16 %v709, %v708
        %v722 = vpack.c.b16 %v711, %v710
        %v723 = vpack.c.b16 %v713, %v712
        %v724 = vpack.c.b16 %v715, %v714
        %v725 = vpack.c.b16 %v717, %v716
        %734 = vmatpush.bf16.msra.mxu0 %v725
        %735 = vmatpush.bf16.msra.mxu0 %v724
        %736 = vmatpush.bf16.msra.mxu0 %v723
        %737 = vmatpush.bf16.msra.mxu0 %v722
        %738 = vmatpush.bf16.msra.mxu0 %v721
        %739 = vmatpush.bf16.msra.mxu0 %v720
        %740 = vmatpush.bf16.msra.mxu0 %v719
        %741 = vmatpush.bf16.msra.mxu0 %v718
        %742 = vmatmul.bf16.gmra.mxu0 %v658
        %v743 = vpop.f32.mrf.mxu0
        %v744 = vadd.f32 %v684, %v743
        %v745 = vpop.f32.mrf.mxu0
        %v746 = vadd.f32 %v684, %v745
        %747 = vmatmul.bf16.gmra.mxu0 %v659
        %v748 = vpop.f32.mrf.mxu0
        %v749 = vadd.f32 %v684, %v748
        %v750 = vpop.f32.mrf.mxu0
        %v751 = vadd.f32 %v684, %v750
        %752 = vmatmul.bf16.gmra.mxu0 %v660
        %v753 = vpop.f32.mrf.mxu0
        %v754 = vadd.f32 %v684, %v753
        %v755 = vpop.f32.mrf.mxu0
        %v756 = vadd.f32 %v684, %v755
        %757 = vmatmul.bf16.gmra.mxu0 %v661
        %v758 = vpop.f32.mrf.mxu0
        %v759 = vadd.f32 %v684, %v758
        %v760 = vpop.f32.mrf.mxu0
        %v761 = vadd.f32 %v684, %v760
        %762 = vmatmul.bf16.gmra.mxu0 %v662
        %v763 = vpop.f32.mrf.mxu0
        %v764 = vadd.f32 %v684, %v763
        %v765 = vpop.f32.mrf.mxu0
        %v766 = vadd.f32 %v684, %v765
        %767 = vmatmul.bf16.gmra.mxu0 %v663
        %v768 = vpop.f32.mrf.mxu0
        %v769 = vadd.f32 %v684, %v768
        %v770 = vpop.f32.mrf.mxu0
        %v771 = vadd.f32 %v684, %v770
        %772 = vmatmul.bf16.gmra.mxu0 %v664
        %v773 = vpop.f32.mrf.mxu0
        %v774 = vadd.f32 %v684, %v773
        %v775 = vpop.f32.mrf.mxu0
        %v776 = vadd.f32 %v684, %v775
        %777 = vmatmul.bf16.gmra.mxu0 %v665
        %v778 = vpop.f32.mrf.mxu0
        %v779 = vadd.f32 %v684, %v778
        %v780 = vpop.f32.mrf.mxu0
        %v781 = vadd.f32 %v684, %v780
        %782 = vdwg.mxu0
        %783 = vxpose.xlu0.b32.start [1/16] %v744, 128
        %784 = vxpose.xlu0.b32.cont [2/16] %v746, 128
        %785 = vxpose.xlu0.b32.cont [3/16] %v749, 128
        %786 = vxpose.xlu0.b32.cont [4/16] %v751, 128
        %787 = vxpose.xlu0.b32.cont [5/16] %v754, 128
        %788 = vxpose.xlu0.b32.cont [6/16] %v756, 128
        %789 = vxpose.xlu0.b32.cont [7/16] %v759, 128
        %790 = vxpose.xlu0.b32.cont [8/16] %v761, 128
        %791 = vxpose.xlu0.b32.cont [9/16] %v764, 128
        %792 = vxpose.xlu0.b32.cont [10/16] %v766, 128
        %793 = vxpose.xlu0.b32.cont [11/16] %v769, 128
        %794 = vxpose.xlu0.b32.cont [12/16] %v771, 128
        %795 = vxpose.xlu0.b32.cont [13/16] %v774, 128
        %796 = vxpose.xlu0.b32.cont [14/16] %v776, 128
        %797 = vxpose.xlu0.b32.cont [15/16] %v779, 128
        %798 = vxpose.xlu0.b32.end [16/16] %v781, 128
        %v799 = vpop.trf.xlu0
        %v800 = vpop.trf.xlu0
        %v801 = vpop.trf.xlu0
        %v802 = vpop.trf.xlu0
        %v803 = vpop.trf.xlu0
        %v804 = vpop.trf.xlu0
        %v805 = vpop.trf.xlu0
        %v806 = vpop.trf.xlu0
        %v807 = vpop.trf.xlu0
        %v808 = vpop.trf.xlu0
        %v809 = vpop.trf.xlu0
        %v810 = vpop.trf.xlu0
        %v811 = vpop.trf.xlu0
        %v812 = vpop.trf.xlu0
        %v813 = vpop.trf.xlu0
        %v814 = vpop.trf.xlu0
        %815 = vst [vmem:[%s354] sm:$0x1] %v799
        %s816 = sand.u32 %s186, 1
        %s817 = scalar_lea.sflag [#allocation4], %s816
        %s818 = sand.u32 %s186, 1
        %s819 = scalar_lea.vmem [#allocation10], %s818
        // Predicated region
        $region65: #{tasklayer_similarity.1} parent=47 // pred_check
          %p820 = pneg %p196
        $region66: #{tasklayer_similarity.1} parent=47 // pred_check_branch
          %822 = sbr.rel (%p820) target = $region68
        $region67: #{tasklayer_similarity.1} parent=47 // pred_region
          %824 = vsyncadd %s817, 0
          %s825 = scalar_lea.hbm %s7, %s26
          %s827 = sshll.u32 %s819, 4
          %s828 = int_to_ptr.vmem [resolvable:$true] %s827
          %s829 = sshll.u32 %s825, 4
          %s830 = int_to_ptr.hbm [resolvable:$true] %s829
          %832 = dma.vmem_to_hbm [thread:$0]  %s828, 16, %s830, %s817
        $region68: #{tasklayer_similarity.1} parent=47 // pred_fallthru
          _
      $region48: #{tasklayer_similarity.1} parent=5 // pred_fallthru
        _
      %p833 = scmp.le.s32.totalorder 2, %s21
      // Predicated region
      $region69: #{tasklayer_similarity.1} parent=5 // pred_check
        %p834 = pneg %p833
      $region70: #{tasklayer_similarity.1} parent=5 // pred_check_branch
        %836 = sbr.rel (%p834) target = $region72
      $region71: #{tasklayer_similarity.1} parent=5 // pred_region
        %s837 = ssub.s32 %s21, 2
        // Predicated region
        $region73: #{tasklayer_similarity.1} parent=71 // pred_check
          %p838 = pneg %p202
        $region74: #{tasklayer_similarity.1} parent=71 // pred_check_branch
          %840 = sbr.rel (%p838) target = $region76
        $region75: #{tasklayer_similarity.1} parent=71 // pred_region
          %s841 = sand.u32 %s187, 1
          %s842 = scalar_lea.sflag [#allocation4], %s841
          %s843 = sand.u32 %s187, 1
          %s844 = scalar_lea.vmem [#allocation10], %s843
          %846 = dma.done %s842, 16
        $region76: #{tasklayer_similarity.1} parent=71 // pred_fallthru
          _
      $region72: #{tasklayer_similarity.1} parent=5 // pred_fallthru
        _
    $region6: #{tasklayer_similarity.1} parent=1 // loop_footer
      %s25 = sadd.s32 1, %s21
    $region7: #{tasklayer_similarity.1} parent=1 // loop_footer_branch
      %20 = sbr.rel target = $region3
    $region8: #{tasklayer_similarity.1} parent=1 // loop_exit
      _
    %847 = vsyncpa [#allocation3], 1
    %s848 = scalar_lea.sflag [#allocation3], 1
    %849 = vsyncpa %s848, 1
    %850 = vsyncpa [#allocation6], 1
    %851 = vsyncpa [#allocation9], 1
    %852 = vsyncpa [#allocation4], 1
    %s853 = scalar_lea.sflag [#allocation4], 1
    %854 = vsyncpa %s853, 1

</llo_original>
